<compile_context>
chip_gen: v5e
topology: v5e:2x2
jax: 0.10.0
libtpu: 0.0.40
codegen_flags: <defaults>
</compile_context>

<pallas_src>
import functools

import jax
import jax.numpy as jnp
from jax.experimental import pallas as pl
from jax.experimental.pallas import tpu as pltpu

_LANES = 128
_SUBLANES = 8


def _round_up(x, m):
    return ((x + m - 1) // m) * m


def _cdiv(a, b):
    return -(-a // b)


def _sq_sum_kernel(red_axis, sq_ref, out_ref):
    """Accumulate a (tile_rows, 128) block of squared magnitudes into the
    resident (8, 128) partial-sum block for this shard."""
    @pl.when(pl.program_id(red_axis) == 0)
    def _():
        out_ref[...] = jnp.zeros_like(out_ref)

    sq = sq_ref[...]                                   # (tile_rows, 128) f32
    # tile_rows is a multiple of 8 (enforced in the wrapper), so this reshape
    # is a free tile-aligned relayout and the sum is vreg-wise VPU adds.
    out_ref[...] += jnp.sum(sq.reshape(-1, _SUBLANES, sq.shape[-1]), axis=0)


def cmatrix_mse_loss(pred, target, *, max_tile_rows=4096, num_shards=1,
                     min_pallas_numel=1 << 20):
    """loss = sum(|pred - target|^2) / numel(target). Returns scalar float32.

    num_shards=1 is right for single-TensorCore chips (v5e / v6e).  On v7x
    (2 TCs/chip) pass num_shards=2 to shard the streaming reduce across cores
    via CORE_PARALLEL.
    """
    assert pred.shape == target.shape
    assert max_tile_rows % _SUBLANES == 0

    pred = jnp.asarray(pred)
    target = jnp.asarray(target)
    numel = target.size                       # complex (or real) element count

    # Fused |d|^2 in XLA: one f32 value per input element, single slab.
    d = pred - target
    if jnp.issubdtype(d.dtype, jnp.complexfloating):
        dr = jnp.real(d).astype(jnp.float32)
        di = jnp.imag(d).astype(jnp.float32)
        mag = dr * dr + di * di
    else:
        df = d.astype(jnp.float32)
        mag = df * df

    # Small inputs: the Pallas launch + slab round trip is pure overhead;
    # a single fused XLA reduction reads the operands exactly once.
    if numel < min_pallas_numel:
        return jnp.sum(mag) / numel

    # --- Tiling: rows of 128 lanes, split across shards, minimal padding. ---
    rows = max(_cdiv(numel, _LANES), 1)
    rows_per_shard_min = _cdiv(rows, num_shards)
    steps_per_shard = max(_cdiv(rows_per_shard_min, max_tile_rows), 1)
    tile_rows = _round_up(_cdiv(rows_per_shard_min, steps_per_shard), _SUBLANES)
    rows_per_shard = steps_per_shard * tile_rows
    total_rows = num_shards * rows_per_shard
    padded_f = total_rows * _LANES

    flat = mag.reshape(-1)
    if padded_f != numel:
        # Zero padding contributes zero to the sum; numel divisor unchanged.
        flat = jnp.pad(flat, (0, padded_f - numel))
    slab = flat.reshape(total_rows, _LANES)

    if num_shards == 1:
        grid = (steps_per_shard,)
        in_spec = pl.BlockSpec((tile_rows, _LANES), lambda j: (j, 0))
        out_spec = pl.BlockSpec((_SUBLANES, _LANES), lambda j: (0, 0))
        dim_sem = ("arbitrary",)
        red_axis = 0
    else:
        grid = (num_shards, steps_per_shard)
        in_spec = pl.BlockSpec(
            (tile_rows, _LANES),
            lambda s, j: (s * steps_per_shard + j, 0),
        )
        out_spec = pl.BlockSpec((_SUBLANES, _LANES), lambda s, j: (s, 0))
        # True per-TensorCore sharding on v7x; plain "parallel" is ~no-op.
        dim_sem = (pltpu.CORE_PARALLEL, pltpu.ARBITRARY)
        red_axis = 1

    out_bytes = num_shards * _SUBLANES * _LANES * 4
    partials = pl.pallas_call(
        functools.partial(_sq_sum_kernel, red_axis),
        out_shape=jax.ShapeDtypeStruct((num_shards * _SUBLANES, _LANES),
                                       jnp.float32),
        grid_spec=pltpu.PrefetchScalarGridSpec(
            num_scalar_prefetch=0,
            grid=grid,
            in_specs=[in_spec],
            out_specs=out_spec,
        ),
        compiler_params=pltpu.CompilerParams(
            dimension_semantics=dim_sem,
            # 2 buffers x tile_rows x 128 x 4B <= 4 MiB: plenty of headroom
            # under v7x's 64 MiB physical / 32 MiB scoped-default VMEM.
            vmem_limit_bytes=32 * 1024 * 1024,
        ),
        cost_estimate=pl.CostEstimate(
            flops=padded_f,               # one add per slab element
            transcendentals=0,
            bytes_accessed=padded_f * 4 + out_bytes,
        ),
    )(slab)

    # Single tiny final cross-lane reduce + mean over element count.
    return jnp.sum(partials) / numel


if __name__ == "__main__":
    key = jax.random.PRNGKey(0)
    k1, k2, k3, k4 = jax.random.split(key, 4)

    B, C, H, W = 2, 4, 16, 16  # 2048 complex elements
    pred = (jax.random.normal(k1, (B, C, H, W), jnp.float32)
            + 1j * jax.random.normal(k2, (B, C, H, W), jnp.float32)
            ).astype(jnp.complex64)
    target = (jax.random.normal(k3, (B, C, H, W), jnp.float32)
              + 1j * jax.random.normal(k4, (B, C, H, W), jnp.float32)
              ).astype(jnp.complex64)

    # Force the Pallas kernel path for the smoke test (the default cutoff
    # would route this small input through the fused XLA reduction).
    loss = cmatrix_mse_loss(pred, target, min_pallas_numel=0)
    loss = jax.block_until_ready(loss)

    # pure-JAX reference
    ref = jnp.sum(jnp.abs(pred - target) ** 2) / pred.size
    assert jnp.allclose(loss, ref, rtol=1e-5, atol=1e-5), (loss, ref)

    # Also sanity-check the small-input (fused XLA) fast path.
    loss_small = jax.block_until_ready(cmatrix_mse_loss(pred, target))
    assert jnp.allclose(loss_small, ref, rtol=1e-5, atol=1e-5), (loss_small, ref)

    # Real-valued inputs take the no-imag-plane path.
    loss_real = jax.block_until_ready(
        cmatrix_mse_loss(jnp.real(pred), jnp.real(target), min_pallas_numel=0))
    ref_real = jnp.sum((jnp.real(pred) - jnp.real(target)) ** 2) / pred.size
    assert jnp.allclose(loss_real, ref_real, rtol=1e-5, atol=1e-5), (loss_real, ref_real)

    print("KERNEL_OK")
</pallas_src>

<mosaic_0001>
module attributes {stable_mosaic.version = 11 : i64} {
  func.func @_sq_sum_kernel(%arg0: i32, %arg1: memref<16x128xf32, #tpu.memory_space<vmem>>, %arg2: memref<8x128xf32, #tpu.memory_space<vmem>>) attributes {dimension_semantics = [#tpu.dimension_semantics<arbitrary>], iteration_bounds = array<i64: 1>, scalar_prefetch = 0 : i64, scratch_operands = 0 : i64, tpu.core_type = #tpu.core_type<tc>, window_params = [{transform_indices = @transform_0, window_bounds = array<i64: 16, 128>}, {pipeline_mode = #tpu.pipeline_mode<synchronous>, transform_indices = @transform_1, window_bounds = array<i64: 8, 128>}]} {
    %c0_i32 = arith.constant 0 : i32
    %0 = arith.cmpi eq, %arg0, %c0_i32 : i32
    %1 = arith.extui %0 : i1 to i32
    %c0_i32_0 = arith.constant 0 : i32
    %2 = arith.cmpi ne, %1, %c0_i32_0 : i32
    scf.if %2 {
      %cst_6 = arith.constant 0.000000e+00 : f32
      %9 = vector.broadcast %cst_6 : f32 to vector<8x128xf32>
      %c0_7 = arith.constant 0 : index
      %c0_8 = arith.constant 0 : index
      %10 = vector.load %arg2[%c0_7, %c0_8] : memref<8x128xf32, #tpu.memory_space<vmem>>, vector<8x128xf32>
      tpu.vector_store %arg2[%c0_7, %c0_8], %9 {strides = array<i32>} : memref<8x128xf32, #tpu.memory_space<vmem>>, vector<8x128xf32>,
    } else {
    }
    %c0 = arith.constant 0 : index
    %c0_1 = arith.constant 0 : index
    %3 = vector.load %arg1[%c0, %c0_1] : memref<16x128xf32, #tpu.memory_space<vmem>>, vector<16x128xf32>
    %c0_2 = arith.constant 0 : index
    %c0_3 = arith.constant 0 : index
    %4 = vector.load %arg2[%c0_2, %c0_3] : memref<8x128xf32, #tpu.memory_space<vmem>>, vector<8x128xf32>
    %5 = vector.shape_cast %3 : vector<16x128xf32> to vector<2x8x128xf32>
    %cst = arith.constant dense<0.000000e+00> : vector<8x128xf32>
    %6 = vector.multi_reduction <add>, %5, %cst [0] : vector<2x8x128xf32> to vector<8x128xf32>
    %7 = arith.addf %4, %6 : vector<8x128xf32>
    %c0_4 = arith.constant 0 : index
    %c0_5 = arith.constant 0 : index
    %8 = vector.load %arg2[%c0_4, %c0_5] : memref<8x128xf32, #tpu.memory_space<vmem>>, vector<8x128xf32>
    tpu.vector_store %arg2[%c0_4, %c0_5], %7 {strides = array<i32>} : memref<8x128xf32, #tpu.memory_space<vmem>>, vector<8x128xf32>,
    return
  }
  func.func @transform_0(%arg0: i32) -> (i32, i32) {
    %c0_i32 = arith.constant 0 : i32
    %c0_i32_0 = arith.constant 0 : i32
    return %arg0, %c0_i32 : i32, i32
  }
  func.func @transform_1(%arg0: i32) -> (i32, i32) {
    %c0_i32 = arith.constant 0 : i32
    %c0_i32_0 = arith.constant 0 : i32
    %c0_i32_1 = arith.constant 0 : i32
    return %c0_i32, %c0_i32_0 : i32, i32
  }
}

</mosaic_0001>

<llo_original>
// kernel: tpu_custom_call.1
$region0: #{tpu_custom_call.1}
  #allocation0 [shape = 'u32[]', space=smem, size = 0x4, offset = 0x4, fixed_abs, tag = 'smem constant byte address 0x4 - core index']
  #allocation1 [shape = 'u32[72,128]{1,0:T(1,128)}', space=vmem, size = 0x9000, scoped, tag = 'internal scratch']
  %s0 = inlined_call_operand.hbm [shape: f32[16,128], index: 0, kind: input, shape index: {}]
  %s1 = inlined_call_operand.hbm [shape: f32[8,128], index: 1, kind: output, shape index: {}]
  %s2 = sld [smem:[#allocation0]]
  $region22: #{tpu_custom_call.1} parent=0
    _
  %s4 = ssub.s32 1, %s2
  %s5 = scalar_select 0, %s4, %s2
  $region1: #{tpu_custom_call.1} parent=0
    #allocation2 [shape = 'u8[8192]{0}', space=vmem, size = 0x2000, scoped, tag = 'input window, operand 0, single buffered']
    #allocation3 [shape = 's32[1]{0}', space=sflag, size = 0x4, scoped, tag = 'scoped memory for tpu_custom_call.1']
    #allocation4 [shape = 's32[1]{0}', space=sflag, size = 0x4, scoped, tag = 'scoped memory for tpu_custom_call.1']
    #allocation5 [shape = 'u8[4096]{0}', space=vmem, size = 0x1000, scoped, tag = 'output window, operand 0, single buffered']
    %6 = vsyncpa [#allocation3], 0
    %7 = vsyncpa [#allocation4], 0
    // Predicated region
    $region2: #{tpu_custom_call.1} parent=1 // pred_check
      _
    $region3: #{tpu_custom_call.1} parent=1 // pred_check_branch
      %9 = sbr.rel (0) target = $region5
    $region4: #{tpu_custom_call.1} parent=1 // pred_region
      %11 = vsyncadd [#allocation3], 0
      %s12 = sshll.u32 %s0, 4
      %s13 = int_to_ptr.hbm [resolvable:$true] %s12
      %s14 = sshll.u32 [#allocation2], 4
      %s15 = int_to_ptr.vmem [resolvable:$true] %s14
      %20 = dma.hbm_to_vmem [thread:$0]  %s13, 256, %s15, [#allocation3], 128, 128, 8
    $region5: #{tpu_custom_call.1} parent=1 // pred_fallthru
      _
    // Predicated region
    $region6: #{tpu_custom_call.1} parent=1 // pred_check
      _
    $region7: #{tpu_custom_call.1} parent=1 // pred_check_branch
      %22 = sbr.rel (0) target = $region9
    $region8: #{tpu_custom_call.1} parent=1 // pred_region
      %24 = dma.done [#allocation3], 256
    $region9: #{tpu_custom_call.1} parent=1 // pred_fallthru
      _
    %p25 = scmp.eq.s32.totalorder 0, 0
    // Predicated region
    $region10: #{tpu_custom_call.1} parent=1 // pred_check
      %p26 = pneg %p25
    $region11: #{tpu_custom_call.1} parent=1 // pred_check_branch
      %28 = sbr.rel (%p26) target = $region13
    $region12: #{tpu_custom_call.1} parent=1 // pred_region
      %29 = vst [vmem:[#allocation5] sm:$0xff] 0.0
    $region13: #{tpu_custom_call.1} parent=1 // pred_fallthru
      _
    %v30 = vld [vmem:[#allocation2] sm:$0xff]
    %v31 = vld [vmem:[#allocation2 + $0x8] sm:$0xff]
    %v32 = vld [vmem:[#allocation5] sm:$0xff]
    %v33 = vadd.f32 %v30, %v31
    %v34 = vadd.f32 %v32, %v33
    %35 = vst [vmem:[#allocation5] sm:$0xff] %v34
    // Predicated region
    $region14: #{tpu_custom_call.1} parent=1 // pred_check
      _
    $region15: #{tpu_custom_call.1} parent=1 // pred_check_branch
      %37 = sbr.rel (0) target = $region17
    $region16: #{tpu_custom_call.1} parent=1 // pred_region
      %39 = vsyncadd [#allocation4], 0
      %s41 = sshll.u32 [#allocation5], 4
      %s42 = int_to_ptr.vmem [resolvable:$true] %s41
      %s43 = sshll.u32 %s1, 4
      %s44 = int_to_ptr.hbm [resolvable:$true] %s43
      %46 = dma.vmem_to_hbm [thread:$0]  %s42, 128, %s44, [#allocation4]
    $region17: #{tpu_custom_call.1} parent=1 // pred_fallthru
      _
    // Predicated region
    $region18: #{tpu_custom_call.1} parent=1 // pred_check
      _
    $region19: #{tpu_custom_call.1} parent=1 // pred_check_branch
      %48 = sbr.rel (0) target = $region21
    $region20: #{tpu_custom_call.1} parent=1 // pred_region
      %50 = dma.done [#allocation4], 128
    $region21: #{tpu_custom_call.1} parent=1 // pred_fallthru
      _
    %51 = vsyncpa [#allocation3], 1
    %52 = vsyncpa [#allocation4], 1

</llo_original>
